<compile_context>
chip_gen: v6e
topology: v6e:2x2x1
jax: 0.10.0
libtpu: 0.0.40
codegen_flags: <defaults>
</compile_context>

<pallas_src>
import functools

import jax
import jax.numpy as jnp
from jax import lax
from jax.experimental import pallas as pl
from jax.experimental.pallas import tpu as pltpu


# ---------------------------------------------------------------------------
# Kernel bodies
# ---------------------------------------------------------------------------

def _fused_heads(l2_normalize, k, x_ref, w_ref, b_ref):
    """Shared block body: fused 3-head matmul + algebraic L2 fold + bias.

    Returns (fused_f32, col, is_score_col) where col is a (1, o_pad) int32
    column iota and is_score_col a (1, o_pad) bool predicate (reused for the
    min/max masks downstream -- no full-slab iota/compare work).
    """
    x = x_ref[...]                                     # (rows, D)
    o_pad = w_ref.shape[1]
    col = lax.broadcasted_iota(jnp.int32, (1, o_pad), 1)
    is_score_col = (col >= 1) & (col < 1 + k)

    fused = jnp.dot(x, w_ref[...], preferred_element_type=jnp.float32)

    if l2_normalize:
        # F.normalize(x): x / max(||x||, 1e-12) == x * rsqrt(max(||x||^2, 1e-24))
        xf = x.astype(jnp.float32)                     # f32 accumulation
        sumsq = jnp.sum(xf * xf, axis=1, keepdims=True)    # (rows, 1)
        inv = lax.rsqrt(jnp.maximum(sumsq, 1e-24))          # EUP
        # linearity: (x * inv) @ ws == (x @ ws) * inv ; scale score cols only
        fused = fused * jnp.where(is_score_col, inv, 1.0)

    fused = fused + b_ref[...].astype(jnp.float32)     # bias after scaling
    return fused, col, is_score_col


def _single_block_kernel(l2_normalize, mask_type, n_valid, k, c_orig,
                         x_ref, w_ref, b_ref, out_ref):
    """Gridless path: whole problem in one block, col-0 fixup in-kernel."""
    fused, col, is_score_col = _fused_heads(l2_normalize, k, x_ref, w_ref, b_ref)
    n_pad = fused.shape[0]

    if n_valid != n_pad:
        row = lax.broadcasted_iota(jnp.int32, (n_pad, 1), 0)
        is_score = is_score_col & (row < n_valid)      # padded rows excluded
    else:
        is_score = is_score_col

    min_val = jnp.min(jnp.where(is_score, fused, jnp.inf))

    if mask_type == 'orig_model':
        max_val = jnp.max(jnp.where(is_score, fused, -jnp.inf))
        orig_lo = 1 + k + 4
        is_orig_col = (col >= orig_lo) & (col < orig_lo + c_orig)
        # argmax(scores2, dim=1) == 0 <=> background column attains the row max
        # (torch argmax tie-breaks to the first index, so ">=" is exact in f32)
        row_max = jnp.max(jnp.where(is_orig_col, fused, -jnp.inf),
                          axis=1, keepdims=True)
        bg = jnp.max(jnp.where(col == orig_lo, fused, -jnp.inf),
                     axis=1, keepdims=True)
        col0 = jnp.where(bg >= row_max, max_val, min_val)   # (n_pad, 1)
    elif mask_type == 'none':
        col0 = min_val
    else:
        raise NotImplementedError(mask_type)

    # single lane-dense, full-width store
    out_ref[...] = jnp.where(col == 0, col0, fused)


def _tiled_block_kernel(l2_normalize, mask_type, n_valid, k, c_orig, block_rows,
                        x_ref, w_ref, b_ref, out_ref, mm_ref):
    """Row-tiled path: per-block partial min/max, col-0 fixed up in wrapper."""
    fused, col, is_score_col = _fused_heads(l2_normalize, k, x_ref, w_ref, b_ref)

    i = pl.program_id(0)
    row = lax.broadcasted_iota(jnp.int32, (block_rows, 1), 0) + i * block_rows
    is_score = is_score_col & (row < n_valid)          # padded rows excluded

    block_min = jnp.min(jnp.where(is_score, fused, jnp.inf))
    if mask_type == 'orig_model':
        block_max = jnp.max(jnp.where(is_score, fused, -jnp.inf))
        orig_lo = 1 + k + 4
        is_orig_col = (col >= orig_lo) & (col < orig_lo + c_orig)
        row_max = jnp.max(jnp.where(is_orig_col, fused, -jnp.inf),
                          axis=1, keepdims=True)
        bg = jnp.max(jnp.where(col == orig_lo, fused, -jnp.inf),
                     axis=1, keepdims=True)
        indicator = jnp.where(bg >= row_max, 1.0, 0.0)      # (block_rows, 1)
    elif mask_type == 'none':
        block_max = block_min                          # unused
        indicator = jnp.zeros((block_rows, 1), jnp.float32)
    else:
        raise NotImplementedError(mask_type)

    # column 0 carries the per-row background indicator; the global min/max
    # fixup runs on an (N, 1) slice in the wrapper.  Store stays full-width.
    out_ref[...] = jnp.where(col == 0, indicator, fused)

    # partial min/max row for this block: lane 0 = min, lane 1 = max
    lane = lax.broadcasted_iota(jnp.int32, (8, 128), 1)
    mm_ref[...] = jnp.where(lane == 0, block_min,
                            jnp.where(lane == 1, block_max, 0.0))


# ---------------------------------------------------------------------------
# Wrapper
# ---------------------------------------------------------------------------

def prepare_fused_params(params, compute_dtype=jnp.float32):
    """Build the fused weight/bias once (hoist out of the per-call path)."""
    wb, bb = params['bbox_pred']        # (D, 4), (4,)
    wo, bo = params['cls_score_orig']   # (D, C_orig), (C_orig,)
    ws, bs = params['cls_score']        # (D, K), (K,)
    d, k = ws.shape
    c_orig = wo.shape[1]
    o_used = 1 + k + 4 + c_orig
    o_pad = max(128, ((o_used + 127) // 128) * 128)
    cd = compute_dtype
    # single concatenate per array -> one XLA fusion each
    w_fused = jnp.concatenate(
        [jnp.zeros((d, 1), cd), ws.astype(cd), wb.astype(cd), wo.astype(cd),
         jnp.zeros((d, o_pad - o_used), cd)], axis=1)
    b_fused = jnp.concatenate(
        [jnp.zeros((1,), jnp.float32), bs.astype(jnp.float32),
         bb.astype(jnp.float32), bo.astype(jnp.float32),
         jnp.zeros((o_pad - o_used,), jnp.float32)]).reshape(1, o_pad)
    return {'w_fused': w_fused, 'b_fused': b_fused, 'k': int(k),
            'c_orig': int(c_orig)}


def faster_rcnn_predictor_ncd_mask_orig(
        x, params=None, *, num_classes, l2_normalize=False,
        mask_type='orig_model', cluster_mapping=None, fused_params=None,
        compute_dtype=None, block_rows=512, max_single_block_rows=1024):
    """JAX/Pallas equivalent of FasterRCNNPredictorNCDMaskOrig.forward."""
    if mask_type not in ('orig_model', 'none'):
        raise NotImplementedError(mask_type)
    if x.ndim == 4:
        assert tuple(x.shape[2:]) == (1, 1)
        x = x.reshape(x.shape[0], -1)

    if compute_dtype is None:
        compute_dtype = jnp.bfloat16 if x.dtype == jnp.bfloat16 else jnp.float32
    x = x.astype(compute_dtype)
    n, d = x.shape

    if fused_params is None:
        fused_params = prepare_fused_params(params, compute_dtype=compute_dtype)
    w_fused = fused_params['w_fused'].astype(compute_dtype)
    b_fused = fused_params['b_fused'].astype(jnp.float32)
    k = fused_params['k']
    c_orig = fused_params['c_orig']
    o_pad = w_fused.shape[1]
    x_bytes = jnp.dtype(compute_dtype).itemsize

    n_pad8 = ((n + 7) // 8) * 8                       # f32 sublane tile
    use_single = n_pad8 <= max_single_block_rows

    if use_single:
        # ---------------- gridless single-block path (small ROI batches) ----
        n_pad = n_pad8
        x_p = jnp.pad(x, ((0, n_pad - n), (0, 0))) if n_pad != n else x
        kernel = functools.partial(_single_block_kernel, l2_normalize,
                                   mask_type, n, k, c_orig)
        vmem = pl.BlockSpec(memory_space=pltpu.MemorySpace.VMEM)
        cost = pl.CostEstimate(
            flops=2 * n_pad * d * o_pad,
            transcendentals=n_pad if l2_normalize else 0,
            bytes_accessed=(n_pad * d + d * o_pad) * x_bytes
                           + o_pad * 4 + n_pad * o_pad * 4)
        out = pl.pallas_call(
            kernel,
            out_shape=jax.ShapeDtypeStruct((n_pad, o_pad), jnp.float32),
            in_specs=[vmem, vmem, vmem],
            out_specs=vmem,
            cost_estimate=cost,
        )(x_p, w_fused, b_fused)
        scores_new = out[:n, :1 + k]
        bbox4 = out[:n, 1 + k:1 + k + 4]
    else:
        # ---------------- row-tiled parallel path (large ROI batches) -------
        block_rows = max(8, (block_rows // 8) * 8)
        num_blocks = pl.cdiv(n, block_rows)
        n_pad = num_blocks * block_rows
        x_p = jnp.pad(x, ((0, n_pad - n), (0, 0))) if n_pad != n else x
        kernel = functools.partial(_tiled_block_kernel, l2_normalize,
                                   mask_type, n, k, c_orig, block_rows)
        cost = pl.CostEstimate(
            flops=2 * n_pad * d * o_pad,
            transcendentals=n_pad if l2_normalize else 0,
            bytes_accessed=(n_pad * d + d * o_pad) * x_bytes
                           + o_pad * 4 + n_pad * o_pad * 4
                           + num_blocks * 8 * 128 * 4)
        out, mm = pl.pallas_call(
            kernel,
            grid=(num_blocks,),
            in_specs=[
                pl.BlockSpec((block_rows, d), lambda i: (i, 0)),
                pl.BlockSpec((d, o_pad), lambda i: (0, 0)),   # resident weights
                pl.BlockSpec((1, o_pad), lambda i: (0, 0)),   # resident bias
            ],
            out_specs=(
                pl.BlockSpec((block_rows, o_pad), lambda i: (i, 0)),
                pl.BlockSpec((8, 128), lambda i: (i, 0)),
            ),
            out_shape=(
                jax.ShapeDtypeStruct((n_pad, o_pad), jnp.float32),
                jax.ShapeDtypeStruct((num_blocks * 8, 128), jnp.float32),
            ),
            compiler_params=pltpu.CompilerParams(
                dimension_semantics=("parallel",)),
            cost_estimate=cost,
        )(x_p, w_fused, b_fused)

        # global min/max + column-0 fixup on an (N, 1) slice (tiny XLA work)
        min_val = jnp.min(mm[:, 0])
        scores = out[:n, 1:1 + k]
        if mask_type == 'orig_model':
            max_val = jnp.max(mm[:, 1])
            col0 = jnp.where(out[:n, 0] > 0.5, max_val, min_val)
        else:
            col0 = jnp.broadcast_to(min_val, (n,))
        scores_new = jnp.concatenate([col0[:, None], scores], axis=1)
        bbox4 = out[:n, 1 + k:1 + k + 4]

    # torch.cat([bbox]*num_classes, dim=1) — broadcast outside the kernel
    bbox_deltas = jnp.tile(bbox4, (1, num_classes))

    if cluster_mapping is not None:
        # static column permutation/selection of the non-background scores
        s = scores_new[:, 1:][:, jnp.asarray(cluster_mapping)]
        scores_new = jnp.concatenate([scores_new[:, 0:1], s], axis=1)

    return scores_new, bbox_deltas


# ---------------------------------------------------------------------------
# Pure-JAX reference (mirrors the torch forward) + self-test
# ---------------------------------------------------------------------------

def _reference(x, params, *, num_classes, l2_normalize, mask_type):
    x = x.reshape(x.shape[0], -1).astype(jnp.float32)
    wb, bb = params['bbox_pred']
    wo, bo = params['cls_score_orig']
    ws, bs = params['cls_score']
    x_l2 = x
    if l2_normalize:
        nrm = jnp.sqrt(jnp.sum(x * x, axis=1, keepdims=True))
        x_l2 = x / jnp.maximum(nrm, 1e-12)
    bbox = x @ wb + bb
    bbox = jnp.tile(bbox, (1, num_classes))
    scores2 = x @ wo + bo
    scores = x_l2 @ ws + bs
    min_val, max_val = jnp.min(scores), jnp.max(scores)
    is_bg = jnp.argmax(scores2, axis=1, keepdims=True) == 0
    if mask_type == 'orig_model':
        col0 = jnp.where(is_bg, max_val, min_val)
    else:
        col0 = jnp.broadcast_to(min_val, is_bg.shape)
    return jnp.concatenate([col0, scores], axis=1), bbox


if __name__ == "__main__":
    key = jax.random.PRNGKey(0)
    N, D = 8, 32          # rois, feature dim (H = W = 1 box-head features)
    C_ORIG = 5            # original-model classes (background = column 0)
    K = 6                 # NCD prediction-model classes
    NUM_CLASSES = K + 1   # replication factor for class-agnostic bbox deltas

    keys = jax.random.split(key, 8)
    x = jax.random.normal(keys[0], (N, D, 1, 1), dtype=jnp.float32)

    params = {
        'bbox_pred': (0.05 * jax.random.normal(keys[1], (D, 4), jnp.float32),
                      0.01 * jax.random.normal(keys[2], (4,), jnp.float32)),
        'cls_score_orig': (0.05 * jax.random.normal(keys[3], (D, C_ORIG), jnp.float32),
                           0.01 * jax.random.normal(keys[4], (C_ORIG,), jnp.float32)),
        'cls_score': (0.05 * jax.random.normal(keys[5], (D, K), jnp.float32),
                      0.01 * jax.random.normal(keys[6], (K,), jnp.float32)),
    }

    # fused weights precomputed once (hoisted out of the forward path)
    fused = prepare_fused_params(params, compute_dtype=jnp.float32)

    # 1) gridless single-block path, l2 + orig_model mask
    scores_new, bbox_deltas = faster_rcnn_predictor_ncd_mask_orig(
        x, params, num_classes=NUM_CLASSES, l2_normalize=True,
        mask_type='orig_model', cluster_mapping=None, fused_params=fused)
    jax.block_until_ready((scores_new, bbox_deltas))

    assert scores_new.shape == (N, K + 1)
    assert bbox_deltas.shape == (N, 4 * NUM_CLASSES)
    assert scores_new.dtype == jnp.float32 and bbox_deltas.dtype == jnp.float32

    ref_s, ref_b = _reference(x, params, num_classes=NUM_CLASSES,
                              l2_normalize=True, mask_type='orig_model')
    assert jnp.allclose(scores_new, ref_s, atol=1e-5, rtol=1e-5)
    assert jnp.allclose(bbox_deltas, ref_b, atol=1e-5, rtol=1e-5)

    # 2) mask_type='none' fast path, no L2
    s2, b2 = faster_rcnn_predictor_ncd_mask_orig(
        x, params, num_classes=NUM_CLASSES, l2_normalize=False,
        mask_type='none', cluster_mapping=None, fused_params=fused)
    r2s, r2b = _reference(x, params, num_classes=NUM_CLASSES,
                          l2_normalize=False, mask_type='none')
    jax.block_until_ready((s2, b2))
    assert jnp.allclose(s2, r2s, atol=1e-5, rtol=1e-5)
    assert jnp.allclose(b2, r2b, atol=1e-5, rtol=1e-5)

    # 3) force the row-tiled parallel path (per-block partial min/max +
    #    wrapper-side column-0 fixup) at a small shape to verify the grid.
    N2 = 24
    x_big = jax.random.normal(keys[7], (N2, D), dtype=jnp.float32)
    s3, b3 = faster_rcnn_predictor_ncd_mask_orig(
        x_big, params, num_classes=NUM_CLASSES, l2_normalize=True,
        mask_type='orig_model', cluster_mapping=None, fused_params=fused,
        block_rows=8, max_single_block_rows=0)
    r3s, r3b = _reference(x_big, params, num_classes=NUM_CLASSES,
                          l2_normalize=True, mask_type='orig_model')
    jax.block_until_ready((s3, b3))
    assert s3.shape == (N2, K + 1) and b3.shape == (N2, 4 * NUM_CLASSES)
    assert jnp.allclose(s3, r3s, atol=1e-5, rtol=1e-5)
    assert jnp.allclose(b3, r3b, atol=1e-5, rtol=1e-5)

    print("KERNEL_OK")
</pallas_src>

<mosaic_0001>
module attributes {stable_mosaic.version = 11 : i64} {
  func.func @_single_block_kernel(%arg0: memref<8x32xf32, #tpu.memory_space<vmem>>, %arg1: memref<32x128xf32, #tpu.memory_space<vmem>>, %arg2: memref<1x128xf32, #tpu.memory_space<vmem>>, %arg3: memref<8x128xf32, #tpu.memory_space<vmem>>) attributes {dimension_semantics = [], scalar_prefetch = 0 : i64, scratch_operands = 0 : i64, tpu.core_type = #tpu.core_type<tc>} {
    %c0 = arith.constant 0 : index
    %c0_0 = arith.constant 0 : index
    %0 = vector.load %arg0[%c0, %c0_0] : memref<8x32xf32, #tpu.memory_space<vmem>>, vector<8x32xf32>
    %1 = tpu.iota {dimensions = array<i32: 1>} : vector<1x128xi32>
    %c1_i32 = arith.constant 1 : i32
    %2 = vector.broadcast %c1_i32 : i32 to vector<1x128xi32>
    %3 = arith.cmpi sge, %1, %2 : vector<1x128xi32>
    %c7_i32 = arith.constant 7 : i32
    %4 = vector.broadcast %c7_i32 : i32 to vector<1x128xi32>
    %5 = arith.cmpi slt, %1, %4 : vector<1x128xi32>
    %6 = arith.andi %3, %5 : vector<1x128xi1>
    %c0_1 = arith.constant 0 : index
    %c0_2 = arith.constant 0 : index
    %7 = vector.load %arg1[%c0_1, %c0_2] : memref<32x128xf32, #tpu.memory_space<vmem>>, vector<32x128xf32>
    %cst = arith.constant dense<0.000000e+00> : vector<8x128xf32>
    %8 = tpu.matmul %0, %7, %cst {dimension_numbers = #tpu.dot_dimension_numbers<[1], [0], [0], [1], [0, 0, 1, 1], [], []>} : vector<8x32xf32>, vector<32x128xf32>, vector<8x128xf32> -> vector<8x128xf32>
    %9 = arith.mulf %0, %0 : vector<8x32xf32>
    %cst_3 = arith.constant dense<0.000000e+00> : vector<8xf32>
    %10 = vector.multi_reduction <add>, %9, %cst_3 [1] : vector<8x32xf32> to vector<8xf32>
    %11 = vector.shape_cast %10 : vector<8xf32> to vector<8x1xf32>
    %cst_4 = arith.constant 1.000000e-24 : f32
    %12 = vector.broadcast %cst_4 : f32 to vector<8x1xf32>
    %13 = arith.maximumf %11, %12 : vector<8x1xf32>
    %14 = math.rsqrt %13 : vector<8x1xf32>
    %cst_5 = arith.constant 1.000000e+00 : f32
    %15 = vector.shape_cast %6 : vector<1x128xi1> to vector<1x128xi1>
    %16 = vector.broadcast %15 : vector<1x128xi1> to vector<8x128xi1>
    %17 = vector.shape_cast %14 : vector<8x1xf32> to vector<8x1xf32>
    %18 = vector.broadcast %17 : vector<8x1xf32> to vector<8x128xf32>
    %19 = vector.broadcast %cst_5 : f32 to vector<8x128xf32>
    %20 = arith.select %16, %18, %19 : vector<8x128xi1>, vector<8x128xf32>
    %21 = arith.mulf %8, %20 : vector<8x128xf32>
    %c0_6 = arith.constant 0 : index
    %c0_7 = arith.constant 0 : index
    %22 = vector.load %arg2[%c0_6, %c0_7] : memref<1x128xf32, #tpu.memory_space<vmem>>, vector<1x128xf32>
    %23 = vector.broadcast %22 : vector<1x128xf32> to vector<8x128xf32>
    %24 = arith.addf %21, %23 : vector<8x128xf32>
    %cst_8 = arith.constant 0x7F800000 : f32
    %25 = vector.shape_cast %6 : vector<1x128xi1> to vector<1x128xi1>
    %26 = vector.broadcast %25 : vector<1x128xi1> to vector<8x128xi1>
    %27 = vector.broadcast %cst_8 : f32 to vector<8x128xf32>
    %28 = arith.select %26, %24, %27 : vector<8x128xi1>, vector<8x128xf32>
    %29 = vector.shape_cast %28 : vector<8x128xf32> to vector<1x8x128xf32>
    %cst_9 = arith.constant dense<0x7F800000> : vector<1xf32>
    %30 = vector.multi_reduction <minimumf>, %29, %cst_9 [1, 2] : vector<1x8x128xf32> to vector<1xf32>
    %31 = vector.shape_cast %30 : vector<1xf32> to vector<1x1x1xf32>
    %32 = vector.extract %31[0, 0, 0] : f32 from vector<1x1x1xf32>
    %cst_10 = arith.constant 0xFF800000 : f32
    %33 = vector.shape_cast %6 : vector<1x128xi1> to vector<1x128xi1>
    %34 = vector.broadcast %33 : vector<1x128xi1> to vector<8x128xi1>
    %35 = vector.broadcast %cst_10 : f32 to vector<8x128xf32>
    %36 = arith.select %34, %24, %35 : vector<8x128xi1>, vector<8x128xf32>
    %37 = vector.shape_cast %36 : vector<8x128xf32> to vector<1x8x128xf32>
    %cst_11 = arith.constant dense<0xFF800000> : vector<1xf32>
    %38 = vector.multi_reduction <maximumf>, %37, %cst_11 [1, 2] : vector<1x8x128xf32> to vector<1xf32>
    %39 = vector.shape_cast %38 : vector<1xf32> to vector<1x1x1xf32>
    %40 = vector.extract %39[0, 0, 0] : f32 from vector<1x1x1xf32>
    %c11_i32 = arith.constant 11 : i32
    %41 = vector.broadcast %c11_i32 : i32 to vector<1x128xi32>
    %42 = arith.cmpi sge, %1, %41 : vector<1x128xi32>
    %c16_i32 = arith.constant 16 : i32
    %43 = vector.broadcast %c16_i32 : i32 to vector<1x128xi32>
    %44 = arith.cmpi slt, %1, %43 : vector<1x128xi32>
    %45 = arith.andi %42, %44 : vector<1x128xi1>
    %cst_12 = arith.constant 0xFF800000 : f32
    %46 = vector.shape_cast %45 : vector<1x128xi1> to vector<1x128xi1>
    %47 = vector.broadcast %46 : vector<1x128xi1> to vector<8x128xi1>
    %48 = vector.broadcast %cst_12 : f32 to vector<8x128xf32>
    %49 = arith.select %47, %24, %48 : vector<8x128xi1>, vector<8x128xf32>
    %cst_13 = arith.constant dense<0xFF800000> : vector<8xf32>
    %50 = vector.multi_reduction <maximumf>, %49, %cst_13 [1] : vector<8x128xf32> to vector<8xf32>
    %51 = vector.shape_cast %50 : vector<8xf32> to vector<8x1xf32>
    %c11_i32_14 = arith.constant 11 : i32
    %52 = vector.broadcast %c11_i32_14 : i32 to vector<1x128xi32>
    %53 = arith.cmpi eq, %1, %52 : vector<1x128xi32>
    %cst_15 = arith.constant 0xFF800000 : f32
    %54 = vector.shape_cast %53 : vector<1x128xi1> to vector<1x128xi1>
    %55 = vector.broadcast %54 : vector<1x128xi1> to vector<8x128xi1>
    %56 = vector.broadcast %cst_15 : f32 to vector<8x128xf32>
    %57 = arith.select %55, %24, %56 : vector<8x128xi1>, vector<8x128xf32>
    %cst_16 = arith.constant dense<0xFF800000> : vector<8xf32>
    %58 = vector.multi_reduction <maximumf>, %57, %cst_16 [1] : vector<8x128xf32> to vector<8xf32>
    %59 = vector.shape_cast %58 : vector<8xf32> to vector<8x1xf32>
    %60 = arith.cmpf oge, %59, %51 : vector<8x1xf32>
    %61 = vector.broadcast %40 : f32 to vector<8x1xf32>
    %62 = vector.broadcast %32 : f32 to vector<8x1xf32>
    %63 = arith.select %60, %61, %62 : vector<8x1xi1>, vector<8x1xf32>
    %c0_i32 = arith.constant 0 : i32
    %64 = vector.broadcast %c0_i32 : i32 to vector<1x128xi32>
    %65 = arith.cmpi eq, %1, %64 : vector<1x128xi32>
    %66 = vector.shape_cast %65 : vector<1x128xi1> to vector<1x128xi1>
    %67 = vector.broadcast %66 : vector<1x128xi1> to vector<8x128xi1>
    %68 = vector.shape_cast %63 : vector<8x1xf32> to vector<8x1xf32>
    %69 = vector.broadcast %68 : vector<8x1xf32> to vector<8x128xf32>
    %70 = arith.select %67, %69, %24 : vector<8x128xi1>, vector<8x128xf32>
    %c0_17 = arith.constant 0 : index
    %c0_18 = arith.constant 0 : index
    %71 = vector.load %arg3[%c0_17, %c0_18] : memref<8x128xf32, #tpu.memory_space<vmem>>, vector<8x128xf32>
    tpu.vector_store %arg3[%c0_17, %c0_18], %70 {strides = array<i32>} : memref<8x128xf32, #tpu.memory_space<vmem>>, vector<8x128xf32>,
    return
  }
}

</mosaic_0001>

<llo_original>
// kernel: tpu_custom_call.1
$region0: #{tpu_custom_call.1}
  #allocation0 [shape = 'u32[]', space=smem, size = 0x4, offset = 0x4, fixed_abs, tag = 'smem constant byte address 0x4 - core index']
  #allocation1 [shape = 'u32[144,128]{1,0:T(1,128)}', space=vmem, size = 0x12000, scoped, tag = 'internal scratch']
  %s0 = inlined_call_operand.hbm [shape: f32[8,32], index: 0, kind: input, shape index: {}]
  %s1 = inlined_call_operand.hbm [shape: f32[32,128], index: 1, kind: input, shape index: {}]
  %s2 = inlined_call_operand.vmem [shape: f32[1,128], index: 2, kind: input, shape index: {}]
  %s3 = inlined_call_operand.hbm [shape: f32[8,128], index: 3, kind: output, shape index: {}]
  %s4 = sld [smem:[#allocation0]]
  $region30: #{tpu_custom_call.1} parent=0
    _
  %s6 = ssub.s32 1, %s4
  %s7 = scalar_select 0, %s6, %s4
  $region1: #{tpu_custom_call.1} parent=0
    #allocation2 [shape = 'u8[4096]{0}', space=vmem, size = 0x1000, scoped, tag = 'input window, operand 0, single buffered']
    #allocation3 [shape = 's32[1]{0}', space=sflag, size = 0x4, scoped, tag = 'scoped memory for tpu_custom_call.1']
    #allocation4 [shape = 's32[1]{0}', space=sflag, size = 0x4, scoped, tag = 'scoped memory for tpu_custom_call.1']
    #allocation5 [shape = 'u8[16384]{0}', space=vmem, size = 0x4000, scoped, tag = 'input window, operand 1, single buffered']
    #allocation6 [shape = 's32[1]{0}', space=sflag, size = 0x4, scoped, tag = 'scoped memory for tpu_custom_call.1']
    #allocation7 [shape = 'u8[4096]{0}', space=vmem, size = 0x1000, scoped, tag = 'output window, operand 0, single buffered']
    %8 = vsyncpa [#allocation3], 0
    %9 = vsyncpa [#allocation6], 0
    %10 = vsyncpa [#allocation4], 0
    // Predicated region
    $region2: #{tpu_custom_call.1} parent=1 // pred_check
      _
    $region3: #{tpu_custom_call.1} parent=1 // pred_check_branch
      %12 = sbr.rel (0) target = $region5
    $region4: #{tpu_custom_call.1} parent=1 // pred_region
      %s14 = ssub.s32 128, 128
      %15 = vsyncadd [#allocation3], %s14
      %s17 = sshll.u32 [#allocation2], 4
      %s18 = int_to_ptr.vmem [resolvable:$true] %s17
      %20 = dma.hbm_to_vmem [thread:$0]  %s0, 128, %s18, [#allocation3]
    $region5: #{tpu_custom_call.1} parent=1 // pred_fallthru
      _
    // Predicated region
    $region6: #{tpu_custom_call.1} parent=1 // pred_check
      _
    $region7: #{tpu_custom_call.1} parent=1 // pred_check_branch
      %22 = sbr.rel (0) target = $region9
    $region8: #{tpu_custom_call.1} parent=1 // pred_region
      %s24 = ssub.s32 512, 512
      %25 = vsyncadd [#allocation6], %s24
      %s26 = sshll.u32 [#allocation5], 4
      %s27 = int_to_ptr.vmem [resolvable:$true] %s26
      %32 = dma.hbm_to_vmem [thread:$0]  %s1, 512, %s27, [#allocation6], 128, 128, 8
    $region9: #{tpu_custom_call.1} parent=1 // pred_fallthru
      _
    // Predicated region
    $region10: #{tpu_custom_call.1} parent=1 // pred_check
      _
    $region11: #{tpu_custom_call.1} parent=1 // pred_check_branch
      %34 = sbr.rel (0) target = $region13
    $region12: #{tpu_custom_call.1} parent=1 // pred_region
      _
    $region13: #{tpu_custom_call.1} parent=1 // pred_fallthru
      _
    // Predicated region
    $region14: #{tpu_custom_call.1} parent=1 // pred_check
      _
    $region15: #{tpu_custom_call.1} parent=1 // pred_check_branch
      %36 = sbr.rel (0) target = $region17
    $region16: #{tpu_custom_call.1} parent=1 // pred_region
      %37 = dma.done [#allocation3], 128
    $region17: #{tpu_custom_call.1} parent=1 // pred_fallthru
      _
    // Predicated region
    $region18: #{tpu_custom_call.1} parent=1 // pred_check
      _
    $region19: #{tpu_custom_call.1} parent=1 // pred_check_branch
      %39 = sbr.rel (0) target = $region21
    $region20: #{tpu_custom_call.1} parent=1 // pred_region
      %40 = dma.done [#allocation6], 512
    $region21: #{tpu_custom_call.1} parent=1 // pred_fallthru
      _
    %v41 = vld [vmem:[#allocation2] sm:$0xff]
    %v42 = vlaneseq
    %v43 = vand.u32 %v42, 127
    %vm44 = vcmp.ge.s32.totalorder %v43, 1
    %vm45 = vcmp.lt.s32.totalorder %v43, 7
    %vm46 = vmand %vm44, %vm45
    %v47 = vld [vmem:[#allocation5] sm:$0xff]
    %v48 = vld [vmem:[#allocation5 + $0x8] sm:$0xff]
    %v49 = vld [vmem:[#allocation5 + $0x10] sm:$0xff]
    %v50 = vld [vmem:[#allocation5 + $0x18] sm:$0xff]
    %vm51 = vcmask 261120
    %v53 = vsel %vm51, %v41, 0
    %55 = vmatprep.subr.mxu0 0.0
    %56 = vmatpush1.msra.mxu0 0.0
    %57 = vmatprep.subr.mxu0 0.0
    %58 = vmatpush1.msra.mxu0 0.0
    %59 = vmatprep.subr.mxu0 0.0
    %60 = vmatpush1.msra.mxu0 0.0
    %61 = vmatprep.subr.mxu0 0.0
    %62 = vmatpush1.msra.mxu0 0.0
    %63 = vmatprep.subr.mxu0 0.0
    %64 = vmatpush1.msra.mxu0 0.0
    %65 = vmatprep.subr.mxu0 0.0
    %66 = vmatpush1.msra.mxu0 0.0
    %67 = vmatprep.subr.mxu0 0.0
    %68 = vmatpush1.msra.mxu0 0.0
    %69 = vmatprep.subr.mxu0 0.0
    %70 = vmatpush1.msra.mxu0 0.0
    %71 = vmatprep.subr.mxu0 0.0
    %72 = vmatpush1.msra.mxu0 0.0
    %73 = vmatprep.subr.mxu0 0.0
    %74 = vmatpush1.msra.mxu0 0.0
    %75 = vmatprep.subr.mxu0 0.0
    %76 = vmatpush1.msra.mxu0 0.0
    %77 = vmatprep.subr.mxu0 0.0
    %78 = vmatpush1.msra.mxu0 0.0
    %79 = vmatprep.subr.mxu0 0.0
    %80 = vmatpush1.msra.mxu0 %v50
    %81 = vmatprep.subr.mxu0 0.0
    %82 = vmatpush1.msra.mxu0 %v49
    %83 = vmatprep.subr.mxu0 0.0
    %84 = vmatpush1.msra.mxu0 %v48
    %85 = vmatprep.subr.mxu0 0.0
    %86 = vmatpush1.msra.mxu0 %v47
    %87 = vmatprep.subr.mxu0 0.0
    %88 = vmatpush2.msra.mxu0 0.0
    %89 = vmatprep.subr.mxu0 0.0
    %90 = vmatpush2.msra.mxu0 0.0
    %91 = vmatprep.subr.mxu0 0.0
    %92 = vmatpush2.msra.mxu0 0.0
    %93 = vmatprep.subr.mxu0 0.0
    %94 = vmatpush2.msra.mxu0 0.0
    %95 = vmatprep.subr.mxu0 0.0
    %96 = vmatpush2.msra.mxu0 0.0
    %97 = vmatprep.subr.mxu0 0.0
    %98 = vmatpush2.msra.mxu0 0.0
    %99 = vmatprep.subr.mxu0 0.0
    %100 = vmatpush2.msra.mxu0 0.0
    %101 = vmatprep.subr.mxu0 0.0
    %102 = vmatpush2.msra.mxu0 0.0
    %103 = vmatprep.subr.mxu0 0.0
    %104 = vmatpush2.msra.mxu0 0.0
    %105 = vmatprep.subr.mxu0 0.0
    %106 = vmatpush2.msra.mxu0 0.0
    %107 = vmatprep.subr.mxu0 0.0
    %108 = vmatpush2.msra.mxu0 0.0
    %109 = vmatprep.subr.mxu0 0.0
    %110 = vmatpush2.msra.mxu0 0.0
    %111 = vmatprep.subr.mxu0 0.0
    %112 = vmatpush2.msra.mxu0 0.0
    %113 = vmatprep.subr.mxu0 0.0
    %114 = vmatpush2.msra.mxu0 0.0
    %115 = vmatprep.subr.mxu0 0.0
    %116 = vmatpush2.msra.mxu0 0.0
    %117 = vmatprep.subr.mxu0 0.0
    %118 = vmatpush2.msra.mxu0 0.0
    %119 = vmatprep.mubr.f32.mxu0 0.0
    %120 = vmatmul.mubr.f32.gmra.mxu0 %v53
    %v121 = vpop.f32.mrf.mxu0
    %v122 = vadd.f32 0.0, %v121
    %v123 = vpop.f32.mrf.mxu0
    %124 = vdwg.mxu0
    %v125 = vmul.f32 %v41, %v41
    %v126 = vsel %vm51, %v125, 0.0
    %127 = vadd.xlane.f32.xlu0 %v126
    %v128 = vpop.xlane.xlu0 %127
    %v129 = vmax.f32 %v128, 1e-24
    %v130 = vrsqrt.pop %v129
    %v131 = vsel %vm46, 1, 0
    %vm132 = vcmp.eq.s32.totalorder %v131, 1
    %v133 = vsel %vm132, %v130, 1.0
    %v134 = vmul.f32 %v122, %v133
    %v135 = vld [vmem:[%s2] sm:$0x1]
    %v137 = vlaneseq
    %v138 = vshrl.u32 %v137, 7
    %v139 = vsub.s32 0, %v138
    %v140 = vrot.slane %v135, %v139
    %v142 = vadd.f32 %v134, %v140
    %v143 = vsel %vm132, %v142, inf
    %144 = vmin.xlane.f32.xlu0 %v143
    %v145 = vpop.xlane.xlu0 %144
    %v146 = vrot.slane %v145, 4
    %v147 = vmin.f32 %v145, %v146
    %v148 = vrot.slane %v147, 2
    %v149 = vmin.f32 %v147, %v148
    %v150 = vrot.slane %v149, 1
    %v151 = vmin.f32 %v149, %v150
    %s152 = vtos %v151
    %v153 = vsel %vm132, %v142, -inf
    %154 = vmax.xlane.f32.xlu0 %v153
    %v155 = vpop.xlane.xlu0 %154
    %v156 = vrot.slane %v155, 4
    %v157 = vmax.f32 %v155, %v156
    %v158 = vrot.slane %v157, 2
    %v159 = vmax.f32 %v157, %v158
    %v160 = vrot.slane %v159, 1
    %v161 = vmax.f32 %v159, %v160
    %s162 = vtos %v161
    %vm163 = vcmp.ge.s32.totalorder %v43, 11
    %vm164 = vcmp.lt.s32.totalorder %v43, 16
    %vm165 = vmand %vm163, %vm164
    %v166 = vsel %vm165, 1, 0
    %vm167 = vcmp.eq.s32.totalorder %v166, 1
    %v168 = vsel %vm167, %v142, -inf
    %169 = vmax.xlane.f32.xlu0 %v168
    %v170 = vpop.xlane.xlu0 %169
    %vm171 = vcmp.eq.s32.totalorder %v43, 11
    %v172 = vsel %vm171, 1, 0
    %vm173 = vcmp.eq.s32.totalorder %v172, 1
    %v174 = vsel %vm173, %v142, -inf
    %175 = vmax.xlane.f32.xlu0 %v174
    %v176 = vpop.xlane.xlu0 %175
    %vm177 = vcmp.ge.f32.partialorder %v176, %v170
    %v178 = vstv %s162
    %v179 = vstv %s152
    %v180 = vsel %vm177, %v178, %v179
    %vm181 = vcmp.eq.s32.totalorder %v43, 0
    %v182 = vsel %vm181, 1, 0
    %vm183 = vcmp.eq.s32.totalorder %v182, 1
    %v184 = vsel %vm183, %v180, %v142
    %185 = vst [vmem:[#allocation7] sm:$0xff] %v184
    // Predicated region
    $region22: #{tpu_custom_call.1} parent=1 // pred_check
      _
    $region23: #{tpu_custom_call.1} parent=1 // pred_check_branch
      %187 = sbr.rel (0) target = $region25
    $region24: #{tpu_custom_call.1} parent=1 // pred_region
      %s189 = ssub.s32 128, 128
      %190 = vsyncadd [#allocation4], %s189
      %s192 = sshll.u32 [#allocation7], 4
      %s193 = int_to_ptr.vmem [resolvable:$true] %s192
      %195 = dma.vmem_to_hbm [thread:$0]  %s193, 128, %s3, [#allocation4]
    $region25: #{tpu_custom_call.1} parent=1 // pred_fallthru
      _
    // Predicated region
    $region26: #{tpu_custom_call.1} parent=1 // pred_check
      _
    $region27: #{tpu_custom_call.1} parent=1 // pred_check_branch
      %197 = sbr.rel (0) target = $region29
    $region28: #{tpu_custom_call.1} parent=1 // pred_region
      %198 = dma.done [#allocation4], 128
    $region29: #{tpu_custom_call.1} parent=1 // pred_fallthru
      _
    %199 = vsyncpa [#allocation3], 1
    %200 = vsyncpa [#allocation6], 1
    %201 = vsyncpa [#allocation4], 1

</llo_original>
